<compile_context>
chip_gen: v7x
topology: tpu7x:2x2x1
jax: 0.10.0
libtpu: 0.0.40
codegen_flags: <defaults>
</compile_context>

<pallas_src>
import math

import jax
import jax.numpy as jnp
from jax.experimental import pallas as pl
from jax.experimental.pallas import tpu as pltpu


# ----------------------------------------------------------------------------
# Kernels
# ----------------------------------------------------------------------------

def _final_layer_vpu_kernel(x_ref, w_ref, b_ref, o_ref):
    """VPU broadcast-FMA path for tiny channel counts (Cout*Cin small).

    x_ref: (NB, Cin, HWT)   f32 VMEM activations (lane axis = flattened spatial)
    w_ref: (Cout, Cin)      f32 SMEM scalars
    b_ref: (Cout,)          f32 SMEM scalars
    o_ref: (NB, Cout, HWT)  VMEM output (HWT is a multiple of 128 -> unmasked stores)
    """
    cin = x_ref.shape[1]
    cout = o_ref.shape[1]
    for co in range(cout):                       # statically unrolled, Cout*Cin FMAs
        acc = x_ref[:, 0, :] * w_ref[co, 0]      # f32 accumulate on the VPU
        for ci in range(1, cin):
            acc = acc + x_ref[:, ci, :] * w_ref[co, ci]
        o_ref[:, co, :] = (acc + b_ref[co]).astype(o_ref.dtype)


def _final_layer_mxu_kernel(x_ref, w_ref, b_ref, o_ref):
    """MXU path for larger channel counts.

    x_ref: (NB, Cin, HWT)   f32 VMEM
    w_ref: (Cout, Cin)      f32 VMEM (resident across grid steps)
    b_ref: (Cout, 1)        f32 VMEM (resident across grid steps)
    o_ref: (NB, Cout, HWT)  VMEM
    """
    nb = x_ref.shape[0]
    for n in range(nb):                          # statically unrolled over the batch block
        acc = jnp.dot(w_ref[...], x_ref[n], preferred_element_type=jnp.float32)
        o_ref[n] = (acc + b_ref[...]).astype(o_ref.dtype)


# ----------------------------------------------------------------------------
# Block-size chooser (keeps double-buffered x+out blocks under a VMEM budget
# that is safe on v7x's 64 MiB VMEM as well as v5e/v6e).
# ----------------------------------------------------------------------------

_VMEM_BLOCK_BUDGET = 16 * 1024 * 1024   # bytes, for 2x(x block + out block)


def _choose_blocks(n, cin, cout, hw_pad, in_itemsize, out_itemsize,
                   budget_bytes=_VMEM_BLOCK_BUDGET):
    def block_bytes(nb, hwt):
        return 2 * nb * hwt * (cin * in_itemsize + cout * out_itemsize)

    # Largest multiple-of-128 divisor of hw_pad that fits with NB=1.
    m = hw_pad // 128
    hw_tile = 128
    for d in range(m, 0, -1):
        if m % d == 0 and block_bytes(1, 128 * d) <= budget_bytes:
            hw_tile = 128 * d
            break
    # Largest divisor of N that still fits -> collapses the batch into one step
    # whenever the whole problem is small enough.
    nb = 1
    for d in range(n, 0, -1):
        if n % d == 0 and block_bytes(d, hw_tile) <= budget_bytes:
            nb = d
            break
    return nb, hw_tile


# ----------------------------------------------------------------------------
# Wrapper
# ----------------------------------------------------------------------------

def final_layer_forward(x_nchw, weight, bias, *, out_dtype=None):
    """y = Conv2d(in_c, out_c, kernel_size=1)(x); NCHW in / NCHW out."""
    N, Cin, H, W = x_nchw.shape
    Cout, Cin2, kh, kw = weight.shape
    assert Cin == Cin2
    # TODO(synk): only kernel_size=1 (the module's default) has a Pallas path;
    # a general k would need an in-kernel fused im2col over shifted slices.
    assert (kh, kw) == (1, 1), "FinalLayer Pallas kernel supports kernel_size=1"

    out_dtype = x_nchw.dtype if out_dtype is None else out_dtype

    HW = H * W
    HW_pad = -(-HW // 128) * 128                 # lane axis must be a 128 multiple
    x3 = x_nchw.reshape(N, Cin, HW)              # native f32 -- no wrapper cast
    if HW_pad != HW:
        # TODO(synk): masked stores would avoid this pad/slice for spatial sizes
        # that are not multiples of 128 after flattening.
        x3 = jnp.pad(x3, ((0, 0), (0, 0), (0, HW_pad - HW)))

    w2 = weight.reshape(Cout, Cin).astype(jnp.float32)
    b1 = bias.astype(jnp.float32)

    in_itemsize = x3.dtype.itemsize
    out_itemsize = jnp.dtype(out_dtype).itemsize
    nb, hw_tile = _choose_blocks(N, Cin, Cout, HW_pad, in_itemsize, out_itemsize)
    grid = (N // nb, HW_pad // hw_tile)          # (1, 1) for small problems

    x_spec = pl.BlockSpec((nb, Cin, hw_tile), lambda n, h: (n, 0, h))
    o_spec = pl.BlockSpec((nb, Cout, hw_tile), lambda n, h: (n, 0, h))

    use_vpu = Cout * Cin <= 64                   # tiny channels: skip the MXU entirely
    if use_vpu:
        kernel = _final_layer_vpu_kernel
        w_arg, b_arg = w2, b1
        w_spec = pl.BlockSpec(memory_space=pltpu.MemorySpace.SMEM)
        b_spec = pl.BlockSpec(memory_space=pltpu.MemorySpace.SMEM)
    else:
        kernel = _final_layer_mxu_kernel
        w_arg, b_arg = w2, b1.reshape(Cout, 1)
        w_spec = pl.BlockSpec((Cout, Cin), lambda n, h: (0, 0))   # resident weight
        b_spec = pl.BlockSpec((Cout, 1), lambda n, h: (0, 0))     # resident bias

    flops = 2 * N * Cout * Cin * HW_pad
    bytes_accessed = (x3.size * in_itemsize + w2.size * 4 + b1.size * 4
                      + N * Cout * HW_pad * out_itemsize)

    out = pl.pallas_call(
        kernel,
        out_shape=jax.ShapeDtypeStruct((N, Cout, HW_pad), out_dtype),
        grid_spec=pltpu.PrefetchScalarGridSpec(
            num_scalar_prefetch=0,
            grid=grid,
            in_specs=[x_spec, w_spec, b_spec],
            out_specs=o_spec,
        ),
        compiler_params=pltpu.CompilerParams(
            dimension_semantics=("parallel", "arbitrary"),
            vmem_limit_bytes=32 * 1024 * 1024,   # explicit: safe on v5e/v6e/v7x
        ),
        cost_estimate=pl.CostEstimate(
            flops=flops, transcendentals=0, bytes_accessed=bytes_accessed),
    )(x3, w_arg, b_arg)

    if HW_pad != HW:
        out = out[:, :, :HW]
    return out.reshape(N, Cout, H, W)


# ----------------------------------------------------------------------------
# Parameter init (PyTorch-style uniform fan-in scaling)
# ----------------------------------------------------------------------------

def init_final_layer_params(key, in_c, out_c, kernel=1):
    kw_, kb_ = jax.random.split(key)
    scale = 1.0 / math.sqrt(in_c * kernel * kernel)
    W = jax.random.uniform(kw_, (out_c, in_c, kernel, kernel), jnp.float32, -scale, scale)
    b = jax.random.uniform(kb_, (out_c,), jnp.float32, -scale, scale)
    return W, b


# ----------------------------------------------------------------------------
# main
# ----------------------------------------------------------------------------

if __name__ == "__main__":
    key = jax.random.PRNGKey(0)
    kx, kp = jax.random.split(key)

    # Small shapes consistent with the module: batch=2, in_c=4, out_c=2, 16x16.
    N, IN_C, OUT_C, H, W = 2, 4, 2, 16, 16
    x = jax.random.normal(kx, (N, IN_C, H, W), jnp.float32)
    weight, bias = init_final_layer_params(kp, IN_C, OUT_C, kernel=1)

    fwd = jax.jit(final_layer_forward)
    out = jax.block_until_ready(fwd(x, weight, bias))

    assert out.shape == (N, OUT_C, H, W), out.shape
    assert out.dtype == x.dtype, out.dtype
    assert jnp.all(jnp.isfinite(out))

    # Pure-JAX f32 reference; kernel now computes entirely in f32 -> tight tolerance.
    ref = (jnp.einsum("oc,nchw->nohw", weight.reshape(OUT_C, IN_C), x)
           + bias.reshape(1, OUT_C, 1, 1))
    max_err = float(jnp.max(jnp.abs(out - ref)))
    assert jnp.allclose(out, ref, atol=1e-4, rtol=1e-4), max_err

    print("KERNEL_OK")
</pallas_src>

<mosaic_0001>
module attributes {stable_mosaic.version = 11 : i64} {
  func.func @_final_layer_vpu_kernel(%arg0: i32, %arg1: i32, %arg2: memref<2x4x256xf32, #tpu.memory_space<vmem>>, %arg3: memref<2x4xf32, #tpu.memory_space<smem>>, %arg4: memref<2xf32, #tpu.memory_space<smem>>, %arg5: memref<2x2x256xf32, #tpu.memory_space<vmem>>) attributes {dimension_semantics = [#tpu.dimension_semantics<parallel>, #tpu.dimension_semantics<arbitrary>], iteration_bounds = array<i64: 1, 1>, scalar_prefetch = 0 : i64, scratch_operands = 0 : i64, tpu.core_type = #tpu.core_type<tc>, window_params = [{transform_indices = @transform_0, window_bounds = array<i64: 2, 4, 256>}, {transform_indices = @transform_1, window_bounds = array<i64: 2, 4>}, {transform_indices = @transform_2, window_bounds = array<i64: 2>}, {transform_indices = @transform_3, window_bounds = array<i64: 2, 2, 256>}]} {
    %c0 = arith.constant 0 : index
    %c0_0 = arith.constant 0 : index
    %c0_1 = arith.constant 0 : index
    %0 = vector.load %arg2[%c0, %c0_0, %c0_1] : memref<2x4x256xf32, #tpu.memory_space<vmem>>, vector<2x1x256xf32>
    %1 = vector.shape_cast %0 : vector<2x1x256xf32> to vector<2x256xf32>
    %c0_2 = arith.constant 0 : index
    %c0_3 = arith.constant 0 : index
    %2 = memref.load %arg3[%c0_2, %c0_3] : memref<2x4xf32, #tpu.memory_space<smem>>
    %3 = vector.broadcast %2 : f32 to vector<2x256xf32>
    %4 = arith.mulf %1, %3 : vector<2x256xf32>
    %c0_4 = arith.constant 0 : index
    %c1 = arith.constant 1 : index
    %c0_5 = arith.constant 0 : index
    %5 = vector.load %arg2[%c0_4, %c1, %c0_5] : memref<2x4x256xf32, #tpu.memory_space<vmem>>, vector<2x1x256xf32>
    %6 = vector.shape_cast %5 : vector<2x1x256xf32> to vector<2x256xf32>
    %c0_6 = arith.constant 0 : index
    %c1_7 = arith.constant 1 : index
    %7 = memref.load %arg3[%c0_6, %c1_7] : memref<2x4xf32, #tpu.memory_space<smem>>
    %8 = vector.broadcast %7 : f32 to vector<2x256xf32>
    %9 = arith.mulf %6, %8 : vector<2x256xf32>
    %10 = arith.addf %4, %9 : vector<2x256xf32>
    %c0_8 = arith.constant 0 : index
    %c2 = arith.constant 2 : index
    %c0_9 = arith.constant 0 : index
    %11 = vector.load %arg2[%c0_8, %c2, %c0_9] : memref<2x4x256xf32, #tpu.memory_space<vmem>>, vector<2x1x256xf32>
    %12 = vector.shape_cast %11 : vector<2x1x256xf32> to vector<2x256xf32>
    %c0_10 = arith.constant 0 : index
    %c2_11 = arith.constant 2 : index
    %13 = memref.load %arg3[%c0_10, %c2_11] : memref<2x4xf32, #tpu.memory_space<smem>>
    %14 = vector.broadcast %13 : f32 to vector<2x256xf32>
    %15 = arith.mulf %12, %14 : vector<2x256xf32>
    %16 = arith.addf %10, %15 : vector<2x256xf32>
    %c0_12 = arith.constant 0 : index
    %c3 = arith.constant 3 : index
    %c0_13 = arith.constant 0 : index
    %17 = vector.load %arg2[%c0_12, %c3, %c0_13] : memref<2x4x256xf32, #tpu.memory_space<vmem>>, vector<2x1x256xf32>
    %18 = vector.shape_cast %17 : vector<2x1x256xf32> to vector<2x256xf32>
    %c0_14 = arith.constant 0 : index
    %c3_15 = arith.constant 3 : index
    %19 = memref.load %arg3[%c0_14, %c3_15] : memref<2x4xf32, #tpu.memory_space<smem>>
    %20 = vector.broadcast %19 : f32 to vector<2x256xf32>
    %21 = arith.mulf %18, %20 : vector<2x256xf32>
    %22 = arith.addf %16, %21 : vector<2x256xf32>
    %c0_16 = arith.constant 0 : index
    %23 = memref.load %arg4[%c0_16] : memref<2xf32, #tpu.memory_space<smem>>
    %24 = vector.broadcast %23 : f32 to vector<2x256xf32>
    %25 = arith.addf %22, %24 : vector<2x256xf32>
    %c0_17 = arith.constant 0 : index
    %c0_18 = arith.constant 0 : index
    %c0_19 = arith.constant 0 : index
    %26 = vector.load %arg5[%c0_17, %c0_18, %c0_19] : memref<2x2x256xf32, #tpu.memory_space<vmem>>, vector<2x1x256xf32>
    %27 = vector.shape_cast %26 : vector<2x1x256xf32> to vector<2x256xf32>
    %28 = vector.shape_cast %25 : vector<2x256xf32> to vector<2x1x256xf32>
    tpu.vector_store %arg5[%c0_17, %c0_18, %c0_19], %28 {strides = array<i32>} : memref<2x2x256xf32, #tpu.memory_space<vmem>>, vector<2x1x256xf32>,
    %c0_20 = arith.constant 0 : index
    %c0_21 = arith.constant 0 : index
    %c0_22 = arith.constant 0 : index
    %29 = vector.load %arg2[%c0_20, %c0_21, %c0_22] : memref<2x4x256xf32, #tpu.memory_space<vmem>>, vector<2x1x256xf32>
    %30 = vector.shape_cast %29 : vector<2x1x256xf32> to vector<2x256xf32>
    %c1_23 = arith.constant 1 : index
    %c0_24 = arith.constant 0 : index
    %31 = memref.load %arg3[%c1_23, %c0_24] : memref<2x4xf32, #tpu.memory_space<smem>>
    %32 = vector.broadcast %31 : f32 to vector<2x256xf32>
    %33 = arith.mulf %30, %32 : vector<2x256xf32>
    %c0_25 = arith.constant 0 : index
    %c1_26 = arith.constant 1 : index
    %c0_27 = arith.constant 0 : index
    %34 = vector.load %arg2[%c0_25, %c1_26, %c0_27] : memref<2x4x256xf32, #tpu.memory_space<vmem>>, vector<2x1x256xf32>
    %35 = vector.shape_cast %34 : vector<2x1x256xf32> to vector<2x256xf32>
    %c1_28 = arith.constant 1 : index
    %c1_29 = arith.constant 1 : index
    %36 = memref.load %arg3[%c1_28, %c1_29] : memref<2x4xf32, #tpu.memory_space<smem>>
    %37 = vector.broadcast %36 : f32 to vector<2x256xf32>
    %38 = arith.mulf %35, %37 : vector<2x256xf32>
    %39 = arith.addf %33, %38 : vector<2x256xf32>
    %c0_30 = arith.constant 0 : index
    %c2_31 = arith.constant 2 : index
    %c0_32 = arith.constant 0 : index
    %40 = vector.load %arg2[%c0_30, %c2_31, %c0_32] : memref<2x4x256xf32, #tpu.memory_space<vmem>>, vector<2x1x256xf32>
    %41 = vector.shape_cast %40 : vector<2x1x256xf32> to vector<2x256xf32>
    %c1_33 = arith.constant 1 : index
    %c2_34 = arith.constant 2 : index
    %42 = memref.load %arg3[%c1_33, %c2_34] : memref<2x4xf32, #tpu.memory_space<smem>>
    %43 = vector.broadcast %42 : f32 to vector<2x256xf32>
    %44 = arith.mulf %41, %43 : vector<2x256xf32>
    %45 = arith.addf %39, %44 : vector<2x256xf32>
    %c0_35 = arith.constant 0 : index
    %c3_36 = arith.constant 3 : index
    %c0_37 = arith.constant 0 : index
    %46 = vector.load %arg2[%c0_35, %c3_36, %c0_37] : memref<2x4x256xf32, #tpu.memory_space<vmem>>, vector<2x1x256xf32>
    %47 = vector.shape_cast %46 : vector<2x1x256xf32> to vector<2x256xf32>
    %c1_38 = arith.constant 1 : index
    %c3_39 = arith.constant 3 : index
    %48 = memref.load %arg3[%c1_38, %c3_39] : memref<2x4xf32, #tpu.memory_space<smem>>
    %49 = vector.broadcast %48 : f32 to vector<2x256xf32>
    %50 = arith.mulf %47, %49 : vector<2x256xf32>
    %51 = arith.addf %45, %50 : vector<2x256xf32>
    %c1_40 = arith.constant 1 : index
    %52 = memref.load %arg4[%c1_40] : memref<2xf32, #tpu.memory_space<smem>>
    %53 = vector.broadcast %52 : f32 to vector<2x256xf32>
    %54 = arith.addf %51, %53 : vector<2x256xf32>
    %c0_41 = arith.constant 0 : index
    %c1_42 = arith.constant 1 : index
    %c0_43 = arith.constant 0 : index
    %55 = vector.load %arg5[%c0_41, %c1_42, %c0_43] : memref<2x2x256xf32, #tpu.memory_space<vmem>>, vector<2x1x256xf32>
    %56 = vector.shape_cast %55 : vector<2x1x256xf32> to vector<2x256xf32>
    %57 = vector.shape_cast %54 : vector<2x256xf32> to vector<2x1x256xf32>
    tpu.vector_store %arg5[%c0_41, %c1_42, %c0_43], %57 {strides = array<i32>} : memref<2x2x256xf32, #tpu.memory_space<vmem>>, vector<2x1x256xf32>,
    return
  }
  func.func @transform_0(%arg0: i32, %arg1: i32) -> (i32, i32, i32) {
    %c0_i32 = arith.constant 0 : i32
    %c0_i32_0 = arith.constant 0 : i32
    return %arg0, %c0_i32, %arg1 : i32, i32, i32
  }
  func.func @transform_1(%arg0: i32, %arg1: i32) -> (i32, i32) {
    %c0_i32 = arith.constant 0 : i32
    %c0_i32_0 = arith.constant 0 : i32
    %c0_i32_1 = arith.constant 0 : i32
    return %c0_i32, %c0_i32_0 : i32, i32
  }
  func.func @transform_2(%arg0: i32, %arg1: i32) -> i32 {
    %c0_i32 = arith.constant 0 : i32
    %c0_i32_0 = arith.constant 0 : i32
    return %c0_i32 : i32
  }
  func.func @transform_3(%arg0: i32, %arg1: i32) -> (i32, i32, i32) {
    %c0_i32 = arith.constant 0 : i32
    %c0_i32_0 = arith.constant 0 : i32
    return %arg0, %c0_i32, %arg1 : i32, i32, i32
  }
}

</mosaic_0001>

<llo_original>
// kernel: final_layer_forward.1
$region0: #{final_layer_forward.1}
  #allocation0 [shape = 'u32[]', space=smem, size = 0x4, offset = 0x4, fixed_abs, tag = 'smem constant byte address 0x4 - core index']
  #allocation1 [shape = 'u32[144,128]{1,0:T(1,128)}', space=vmem, size = 0x12000, scoped, tag = 'internal scratch']
  %s0 = inlined_call_operand.vmem [shape: f32[2,4,256], index: 0, kind: input, shape index: {}]
  %s1 = inlined_call_operand.vmem [shape: f32[2,4], index: 1, kind: input, shape index: {}]
  %s2 = inlined_call_operand.vmem [shape: f32[2], index: 2, kind: input, shape index: {}]
  %s3 = inlined_call_operand.vmem [shape: f32[2,2,256], index: 3, kind: output, shape index: {}]
  %s4 = sld [smem:[#allocation0]]
  $region30: #{final_layer_forward.1} parent=0
    _
  %s6 = ssub.s32 1, %s4
  %s7 = scalar_select 0, %s6, %s4
  $region1: #{final_layer_forward.1} parent=0
    #allocation2 [shape = 'u8[1024]{0}', space=smem, size = 0x400, scoped, tag = 'input window, operand 1, single buffered']
    #allocation3 [shape = 's32[1]{0}', space=sflag, size = 0x4, scoped, tag = 'scoped memory for final_layer_forward.1']
    #allocation4 [shape = 'u8[512]{0}', space=smem, size = 0x200, scoped, tag = 'input window, operand 2, single buffered']
    #allocation5 [shape = 's32[1]{0}', space=sflag, size = 0x4, scoped, tag = 'scoped memory for final_layer_forward.1']
    %8 = vsyncpa [#allocation3], 0
    %9 = vsyncpa [#allocation5], 0
    // Predicated region
    $region2: #{final_layer_forward.1} parent=1 // pred_check
      _
    $region3: #{final_layer_forward.1} parent=1 // pred_check_branch
      %11 = sbr.rel (0) target = $region5
    $region4: #{final_layer_forward.1} parent=1 // pred_region
      _
    $region5: #{final_layer_forward.1} parent=1 // pred_fallthru
      _
    // Predicated region
    $region6: #{final_layer_forward.1} parent=1 // pred_check
      _
    $region7: #{final_layer_forward.1} parent=1 // pred_check_branch
      %13 = sbr.rel (0) target = $region9
    $region8: #{final_layer_forward.1} parent=1 // pred_region
      %s15 = ssub.s32 32, 32
      %16 = vsyncadd [#allocation3], %s15
      %s18 = sshll.u32 %s1, 4
      %s19 = int_to_ptr.vmem [resolvable:$true] %s18
      %21 = dma.vmem_to_smem %s19, 32, [#allocation2], [#allocation3]
    $region9: #{final_layer_forward.1} parent=1 // pred_fallthru
      _
    // Predicated region
    $region10: #{final_layer_forward.1} parent=1 // pred_check
      _
    $region11: #{final_layer_forward.1} parent=1 // pred_check_branch
      %23 = sbr.rel (0) target = $region13
    $region12: #{final_layer_forward.1} parent=1 // pred_region
      %s25 = ssub.s32 16, 16
      %26 = vsyncadd [#allocation5], %s25
      %s28 = sshll.u32 %s2, 4
      %s29 = int_to_ptr.vmem [resolvable:$true] %s28
      %31 = dma.vmem_to_smem %s29, 16, [#allocation4], [#allocation5]
    $region13: #{final_layer_forward.1} parent=1 // pred_fallthru
      _
    // Predicated region
    $region14: #{final_layer_forward.1} parent=1 // pred_check
      _
    $region15: #{final_layer_forward.1} parent=1 // pred_check_branch
      %33 = sbr.rel (0) target = $region17
    $region16: #{final_layer_forward.1} parent=1 // pred_region
      %34 = dma.done [#allocation3], 32
    $region17: #{final_layer_forward.1} parent=1 // pred_fallthru
      _
    // Predicated region
    $region18: #{final_layer_forward.1} parent=1 // pred_check
      _
    $region19: #{final_layer_forward.1} parent=1 // pred_check_branch
      %36 = sbr.rel (0) target = $region21
    $region20: #{final_layer_forward.1} parent=1 // pred_region
      %37 = dma.done [#allocation5], 16
    $region21: #{final_layer_forward.1} parent=1 // pred_fallthru
      _
    %38 = sfence
    %v39 = vld [vmem:[%s0] ss:$4 sm:$0x3]
    %s40 = scalar_lea.vmem %s0, 8
    %v41 = vld [vmem:[%s40] ss:$4 sm:$0x3]
    %s42 = sld [smem:[#allocation2]]
    %v43 = vstv %s42
    %v44 = vmul.f32 %v39, %v43
    %v45 = vmul.f32 %v41, %v43
    %s46 = scalar_lea.vmem %s0, 1
    %v47 = vld [vmem:[%s46] ss:$4 sm:$0x3]
    %s48 = scalar_lea.vmem %s0, 9
    %v49 = vld [vmem:[%s48] ss:$4 sm:$0x3]
    %s50 = sld [smem:[#allocation2 + $0x1]]
    %v51 = vstv %s50
    %v52 = vmul.f32 %v47, %v51
    %v53 = vmul.f32 %v49, %v51
    %v54 = vadd.f32 %v44, %v52
    %v55 = vadd.f32 %v45, %v53
    %s56 = scalar_lea.vmem %s0, 2
    %v57 = vld [vmem:[%s56] ss:$4 sm:$0x3]
    %s58 = scalar_lea.vmem %s0, 10
    %v59 = vld [vmem:[%s58] ss:$4 sm:$0x3]
    %s60 = sld [smem:[#allocation2 + $0x2]]
    %v61 = vstv %s60
    %v62 = vmul.f32 %v57, %v61
    %v63 = vmul.f32 %v59, %v61
    %v64 = vadd.f32 %v54, %v62
    %v65 = vadd.f32 %v55, %v63
    %s66 = scalar_lea.vmem %s0, 3
    %v67 = vld [vmem:[%s66] ss:$4 sm:$0x3]
    %s68 = scalar_lea.vmem %s0, 11
    %v69 = vld [vmem:[%s68] ss:$4 sm:$0x3]
    %s70 = sld [smem:[#allocation2 + $0x3]]
    %v71 = vstv %s70
    %v72 = vmul.f32 %v67, %v71
    %v73 = vmul.f32 %v69, %v71
    %v74 = vadd.f32 %v64, %v72
    %v75 = vadd.f32 %v65, %v73
    %s76 = sld [smem:[#allocation4]]
    %v77 = vstv %s76
    %v78 = vadd.f32 %v74, %v77
    %v79 = vadd.f32 %v75, %v77
    %v80 = vlaneseq
    %vm81 = vcmp.ge.s32.totalorder %v80, 0
    %vm82 = vcmp.lt.s32.totalorder %v80, 256
    %vm83 = vmand %vm81, %vm82
    %84 = vst.msk [vmem:[%s3] ss:$2 sm:$0x3] %vm83, %v78
    %s85 = scalar_lea.vmem %s3, 4
    %86 = vst.msk [vmem:[%s85] ss:$2 sm:$0x3] %vm83, %v79
    %v87 = vld [vmem:[%s0] ss:$4 sm:$0x3]
    %v88 = vld [vmem:[%s40] ss:$4 sm:$0x3]
    %s89 = sld [smem:[#allocation2 + $0x80]]
    %v90 = vstv %s89
    %v91 = vmul.f32 %v87, %v90
    %v92 = vmul.f32 %v88, %v90
    %v93 = vld [vmem:[%s46] ss:$4 sm:$0x3]
    %v94 = vld [vmem:[%s48] ss:$4 sm:$0x3]
    %s95 = sld [smem:[#allocation2 + $0x81]]
    %v96 = vstv %s95
    %v97 = vmul.f32 %v93, %v96
    %v98 = vmul.f32 %v94, %v96
    %v99 = vadd.f32 %v91, %v97
    %v100 = vadd.f32 %v92, %v98
    %v101 = vld [vmem:[%s56] ss:$4 sm:$0x3]
    %v102 = vld [vmem:[%s58] ss:$4 sm:$0x3]
    %s103 = sld [smem:[#allocation2 + $0x82]]
    %v104 = vstv %s103
    %v105 = vmul.f32 %v101, %v104
    %v106 = vmul.f32 %v102, %v104
    %v107 = vadd.f32 %v99, %v105
    %v108 = vadd.f32 %v100, %v106
    %v109 = vld [vmem:[%s66] ss:$4 sm:$0x3]
    %v110 = vld [vmem:[%s68] ss:$4 sm:$0x3]
    %s111 = sld [smem:[#allocation2 + $0x83]]
    %v112 = vstv %s111
    %v113 = vmul.f32 %v109, %v112
    %v114 = vmul.f32 %v110, %v112
    %v115 = vadd.f32 %v107, %v113
    %v116 = vadd.f32 %v108, %v114
    %s117 = sld [smem:[#allocation4 + $0x1]]
    %v118 = vstv %s117
    %v119 = vadd.f32 %v115, %v118
    %v120 = vadd.f32 %v116, %v118
    %s121 = scalar_lea.vmem %s3, 1
    %122 = vst.msk [vmem:[%s121] ss:$2 sm:$0x3] %vm83, %v119
    %s123 = scalar_lea.vmem %s3, 5
    %124 = vst.msk [vmem:[%s123] ss:$2 sm:$0x3] %vm83, %v120
    // Predicated region
    $region22: #{final_layer_forward.1} parent=1 // pred_check
      _
    $region23: #{final_layer_forward.1} parent=1 // pred_check_branch
      %126 = sbr.rel (0) target = $region25
    $region24: #{final_layer_forward.1} parent=1 // pred_region
      _
    $region25: #{final_layer_forward.1} parent=1 // pred_fallthru
      _
    // Predicated region
    $region26: #{final_layer_forward.1} parent=1 // pred_check
      _
    $region27: #{final_layer_forward.1} parent=1 // pred_check_branch
      %128 = sbr.rel (0) target = $region29
    $region28: #{final_layer_forward.1} parent=1 // pred_region
      _
    $region29: #{final_layer_forward.1} parent=1 // pred_fallthru
      _
    %129 = vsyncpa [#allocation3], 1
    %130 = vsyncpa [#allocation5], 1

</llo_original>
